<compile_context>
chip_gen: v6e
topology: v6e:2x2x1
jax: 0.10.0
libtpu: 0.0.40
codegen_flags: <defaults>
</compile_context>

<pallas_src>
import functools

import jax
import jax.numpy as jnp
import numpy as np
from jax.experimental import pallas as pl
from jax.experimental.pallas import tpu as pltpu

BN_EPS = 1e-5
_F32_PER_COL = 24  # est. live f32-equivalents of VMEM per (channel, column)


# --------------------------------------------------------------------------- #
# device-dependent budgets
# --------------------------------------------------------------------------- #
def _device_profile():
    """Returns (working_set_bytes, vmem_limit_bytes, want_multi_program)."""
    kind = ""
    try:
        kind = jax.devices()[0].device_kind.lower()
    except Exception:
        pass
    if ("v5" in kind) or ("v6" in kind):
        # 128 MiB physical VMEM, 1 TensorCore: maximize tile size.
        return 20 * 1024 * 1024, 96 * 1024 * 1024, False
    # v7x (64 MiB VMEM per TC, 2 TCs) or unknown backend: conservative budget,
    # and make sure the grid has enough programs for both TensorCores.
    return 12 * 1024 * 1024, 44 * 1024 * 1024, True


def _choose_tile_l(L, C, N, working_set_bytes, want_multi_program):
    bytes_per_col = _F32_PER_COL * 4 * max(C, 1)
    t = ((working_set_bytes // bytes_per_col) // 128) * 128
    # Small tiles are the dominant perf cliff for this memory-bound op
    # (~29% of HBM roofline at 128 columns vs ~85% at 512): prefer masking the
    # tail over shrinking below 512 columns, as long as it roughly fits.
    if t < 512 and 512 * bytes_per_col <= 2 * working_set_bytes:
        t = 512
    t = max(t, 128)
    t = min(t, 4096)
    if want_multi_program:
        # v7x megacore: keep >= ~4 grid programs so both TensorCores get work.
        while N * pl.cdiv(L, t) < 4 and t >= 1024:
            t //= 2
    return L if L <= t else t


# --------------------------------------------------------------------------- #
# shared per-tile conv helper
# --------------------------------------------------------------------------- #
def _conv_tile(x_ref, halo_ref, w_ref, *, L, tile_l, mask_tail):
    """Conv1d(k=3, s=1, p=1) on one lane-dense (C_in, tile_l) tile.

    Returns (x_blk, conv, valid):
      x_blk: (tail-masked) native-dtype input tile (also the residual path).
      conv : (C_out, tile_l) f32 conv output, no bias (cancels in train BN).
      valid: (1, tile_l) bool lane-validity mask (None if tile always full).
    """
    x_blk = x_ref[0]                                            # (C_in, tile_l)
    valid = None
    if mask_tail:
        lane = jax.lax.broadcasted_iota(jnp.int32, (1, tile_l), 1)
        valid = (pl.program_id(1) * tile_l + lane) < L
        x_blk = jnp.where(valid, x_blk, jnp.zeros_like(x_blk))  # zero tail garbage

    halo = halo_ref[0, 0]                                       # (C_in, 2)

    # One MXU matmul per tap against the *unshifted* tile: no (3*C_in, tile_l)
    # concat, no shifted activation copies.  Operands stay in the activation
    # dtype; accumulation is f32 on the MXU.
    y0 = jnp.dot(w_ref[0], x_blk, preferred_element_type=jnp.float32)
    y1 = jnp.dot(w_ref[1], x_blk, preferred_element_type=jnp.float32)
    y2 = jnp.dot(w_ref[2], x_blk, preferred_element_type=jnp.float32)
    # Tiny halo matvecs supply the neighbor columns outside this tile (padding=1).
    hl = jnp.dot(w_ref[0], halo[:, 0:1], preferred_element_type=jnp.float32)
    hr = jnp.dot(w_ref[2], halo[:, 1:2], preferred_element_type=jnp.float32)

    if tile_l > 1:
        # Re-align the tap outputs by one lane (single-lane shift, XLU slot).
        left = jnp.concatenate([hl, y0[:, :tile_l - 1]], axis=1)
        right = jnp.concatenate([y2[:, 1:], hr], axis=1)
    else:
        left, right = hl, hr
    conv = left + y1 + right                                    # (C_out, tile_l) f32
    return x_blk, conv, valid


# --------------------------------------------------------------------------- #
# pass 1: per-batch per-channel (sum, sum_sq) of the conv output
# --------------------------------------------------------------------------- #
def _stats_kernel(x_ref, halo_ref, w_ref, stat_ref, *, L, tile_l, mask_tail):
    _, conv, valid = _conv_tile(x_ref, halo_ref, w_ref,
                                L=L, tile_l=tile_l, mask_tail=mask_tail)
    if mask_tail:
        conv = jnp.where(valid, conv, 0.0)
    s = jnp.sum(conv, axis=1, keepdims=True)                    # (C_out, 1)
    ss = jnp.sum(conv * conv, axis=1, keepdims=True)            # (C_out, 1)
    part = jnp.concatenate([s, ss], axis=1)                     # (C_out, 2)

    # j is the ("arbitrary") reduction axis: the (C_out, 2) accumulator block
    # stays resident in VMEM; one tiny writeback per batch row.
    @pl.when(pl.program_id(1) == 0)
    def _init():
        stat_ref[0] = jnp.zeros_like(stat_ref[0])

    stat_ref[0] += part


# --------------------------------------------------------------------------- #
# pass 2: recompute conv tile, apply shift (scale pre-folded into w) + residual + ReLU
# --------------------------------------------------------------------------- #
def _apply_kernel(x_ref, halo_ref, w_ref, shift_ref, o_ref, *, L, tile_l, mask_tail):
    x_blk, conv, _ = _conv_tile(x_ref, halo_ref, w_ref,
                                L=L, tile_l=tile_l, mask_tail=mask_tail)
    y = conv + shift_ref[...] + x_blk.astype(jnp.float32)
    o_ref[0] = jnp.maximum(y, 0.0).astype(o_ref.dtype)          # lane-dense store


# --------------------------------------------------------------------------- #
# wrapper
# --------------------------------------------------------------------------- #
def residual_block(x, w, b, gamma, beta, *, eps=BN_EPS, tile_l=None):
    """Forward of ResidualBlock (shortcut=None branch, in_channels == out_channels).

    x:     (N, C_in, L)      PyTorch Conv1d NCW input (kept as-is; L is the lane dim)
    w:     (C_out, C_in, 3)  PyTorch Conv1d weight layout
    b:     (C_out,)          conv bias -- accepted for API parity but unused: a
                             per-channel bias cancels exactly against the
                             train-mode BatchNorm mean subtraction.
    gamma, beta: (C_out,)    BatchNorm1d affine parameters.
    Returns (N, C_out, L) in x.dtype.
    """
    N, C_in, L = x.shape
    C_out, C_in_w, K = w.shape
    assert C_in_w == C_in
    assert C_out == C_in, "shortcut=None path requires in_channels == out_channels"
    assert K == 3, "kernel implements the default kernel_size=3, padding=1 config"
    # TODO(synk): shortcut branch (in_channels != out_channels) shape-mismatches in
    # the reference PyTorch forward (pad=1 main path vs pad=0 shortcut); not implemented.
    # TODO(synk): BatchNorm running_mean/running_var state updates (training side
    # effect) are not reproduced; only the forward activations are computed.

    working_set, vmem_limit, multi_prog = _device_profile()
    if tile_l is None:
        tile_l = _choose_tile_l(L, max(C_in, C_out), N, working_set, multi_prog)
    assert tile_l == L or tile_l % 128 == 0, "tile_l must be L or a multiple of 128"
    num_tiles = pl.cdiv(L, tile_l)
    mask_tail = (L % tile_l) != 0

    # Per-tile 1-column conv halos (padding=1), left/right packed into ONE input
    # (a single tiny per-step DMA).  O(N*C*num_tiles) elements -> no full-tensor
    # pad or transpose in the wrapper.
    j_idx = jnp.arange(num_tiles)
    left_pos = j_idx * tile_l - 1
    right_pos = (j_idx + 1) * tile_l
    lh = jnp.take(x, jnp.clip(left_pos, 0, L - 1), axis=2)      # (N, C, num_tiles)
    rh = jnp.take(x, jnp.clip(right_pos, 0, L - 1), axis=2)
    lh = jnp.where((left_pos >= 0)[None, None, :], lh, 0)
    rh = jnp.where((right_pos < L)[None, None, :], rh, 0)
    halo = jnp.stack([lh, rh], axis=-1)                         # (N, C, num_tiles, 2)
    halo = jnp.transpose(halo, (0, 2, 1, 3)).astype(x.dtype)    # (N, num_tiles, C, 2)

    # Per-tap weights (3, C_out, C_in) in the activation dtype (MXU-native feed;
    # cast once here, not per grid step).
    w_taps = jnp.transpose(w, (2, 0, 1)).astype(x.dtype)

    x_spec = pl.BlockSpec((1, C_in, tile_l), lambda n, j: (n, 0, j))
    halo_spec = pl.BlockSpec((1, 1, C_in, 2), lambda n, j: (n, j, 0, 0))
    w_spec = pl.BlockSpec((K, C_out, C_in), lambda n, j: (0, 0, 0))
    grid = (N, num_tiles)

    # ---- pass 1: per-batch per-channel partial sums of the conv output ----
    stats = pl.pallas_call(
        functools.partial(_stats_kernel, L=L, tile_l=tile_l, mask_tail=mask_tail),
        out_shape=jax.ShapeDtypeStruct((N, C_out, 2), jnp.float32),
        grid=grid,
        in_specs=[x_spec, halo_spec, w_spec],
        out_specs=pl.BlockSpec((1, C_out, 2), lambda n, j: (n, 0, 0)),
        compiler_params=pltpu.CompilerParams(
            dimension_semantics=("parallel", "arbitrary"),
            vmem_limit_bytes=vmem_limit),
    )(x, halo, w_taps)

    # ---- tiny (C,)-sized BN fold: batch stats -> per-channel scale/shift ----
    # NOTE: var = E[x^2] - E[x]^2 in f32 (clamped at 0): fine for typical
    # activation stats, can lose precision when |mean| >> std and N*L is huge.
    tot = jnp.sum(stats, axis=0)                                # (C_out, 2)
    cnt = jnp.float32(N * L)
    mean = tot[:, 0] / cnt
    var = jnp.maximum(tot[:, 1] / cnt - mean * mean, 0.0)
    scale = gamma.astype(jnp.float32) * jax.lax.rsqrt(var + eps)
    shift = (beta.astype(jnp.float32) - mean * scale).reshape(C_out, 1)
    # Fold the BN scale into the pass-2 weights (one tiny wrapper-side mul on the
    # WEIGHT only), so the per-tile epilogue is just conv + shift + residual.
    w_taps_scaled = (w_taps.astype(jnp.float32)
                     * scale.reshape(1, C_out, 1)).astype(x.dtype)

    # ---- pass 2: recompute conv tile + fused shift + residual + ReLU ----
    out = pl.pallas_call(
        functools.partial(_apply_kernel, L=L, tile_l=tile_l, mask_tail=mask_tail),
        out_shape=jax.ShapeDtypeStruct((N, C_out, L), x.dtype),
        grid=grid,
        in_specs=[x_spec, halo_spec, w_spec,
                  pl.BlockSpec((C_out, 1), lambda n, j: (0, 0))],
        out_specs=pl.BlockSpec((1, C_out, tile_l), lambda n, j: (n, 0, j)),
        compiler_params=pltpu.CompilerParams(
            dimension_semantics=("parallel", "parallel"),
            vmem_limit_bytes=vmem_limit),
    )(x, halo, w_taps_scaled, shift)
    return out


# --------------------------------------------------------------------------- #
# pure-JAX reference (identical semantics, incl. the conv bias) for validation
# --------------------------------------------------------------------------- #
def _reference(x, w, b, gamma, beta, eps=BN_EPS):
    N, C_in, L = x.shape
    C_out, _, K = w.shape
    pad = (K - 1) // 2
    xf = x.astype(jnp.float32)
    xpad = jnp.pad(xf, ((0, 0), (0, 0), (pad, pad)))
    conv = jnp.zeros((N, C_out, L), jnp.float32)
    for k in range(K):
        conv = conv + jnp.einsum("oi,nil->nol", w[:, :, k].astype(jnp.float32),
                                 xpad[:, :, k:k + L])
    conv = conv + b.astype(jnp.float32)[None, :, None]
    mean = jnp.mean(conv, axis=(0, 2), keepdims=True)
    var = jnp.mean((conv - mean) ** 2, axis=(0, 2), keepdims=True)
    out = (conv - mean) * jax.lax.rsqrt(var + eps)
    out = out * gamma.astype(jnp.float32)[None, :, None] \
        + beta.astype(jnp.float32)[None, :, None]
    out = jnp.maximum(out + xf, 0.0)
    return out.astype(x.dtype)


if __name__ == "__main__":
    key = jax.random.PRNGKey(0)
    kx, kw, kb, kg, kbe, kx2 = jax.random.split(key, 6)

    # Small shapes consistent with nn.Conv1d input (N, C, L).
    N, C, L, K = 2, 8, 16, 3
    fan_in = C * K
    bound = 1.0 / np.sqrt(fan_in)
    x = jax.random.normal(kx, (N, C, L), dtype=jnp.float32)
    w = jax.random.uniform(kw, (C, C, K), jnp.float32, -bound, bound)  # (Cout, Cin, K)
    b = jax.random.uniform(kb, (C,), jnp.float32, -bound, bound)
    gamma = 1.0 + 0.1 * jax.random.normal(kg, (C,), jnp.float32)
    beta = 0.1 * jax.random.normal(kbe, (C,), jnp.float32)

    y = jax.block_until_ready(residual_block(x, w, b, gamma, beta))
    y_ref = jax.block_until_ready(_reference(x, w, b, gamma, beta))
    np.testing.assert_allclose(np.asarray(y), np.asarray(y_ref), rtol=3e-4, atol=3e-4)

    # Also exercise the multi-tile + tail-masked path with a forced 128 tile.
    L2 = 300
    x2 = jax.random.normal(kx2, (N, C, L2), dtype=jnp.float32)
    y2 = jax.block_until_ready(residual_block(x2, w, b, gamma, beta, tile_l=128))
    y2_ref = jax.block_until_ready(_reference(x2, w, b, gamma, beta))
    np.testing.assert_allclose(np.asarray(y2), np.asarray(y2_ref), rtol=3e-4, atol=3e-4)

    print("KERNEL_OK")
</pallas_src>

<mosaic_0001>
module attributes {stable_mosaic.version = 11 : i64} {
  func.func @_stats_kernel(%arg0: i32, %arg1: i32, %arg2: memref<1x8x16xf32, #tpu.memory_space<vmem>>, %arg3: memref<1x1x8x2xf32, #tpu.memory_space<vmem>>, %arg4: memref<3x8x8xf32, #tpu.memory_space<vmem>>, %arg5: memref<1x8x2xf32, #tpu.memory_space<vmem>>) attributes {dimension_semantics = [#tpu.dimension_semantics<parallel>, #tpu.dimension_semantics<arbitrary>], iteration_bounds = array<i64: 2, 1>, scalar_prefetch = 0 : i64, scratch_operands = 0 : i64, tpu.core_type = #tpu.core_type<tc>, window_params = [{transform_indices = @transform_0, window_bounds = array<i64: 1, 8, 16>}, {transform_indices = @transform_1, window_bounds = array<i64: 1, 1, 8, 2>}, {pipeline_mode = #tpu.pipeline_mode<synchronous>, transform_indices = @transform_2, window_bounds = array<i64: 3, 8, 8>}, {transform_indices = @transform_3, window_bounds = array<i64: 1, 8, 2>}]} {
    %c0 = arith.constant 0 : index
    %c0_0 = arith.constant 0 : index
    %c0_1 = arith.constant 0 : index
    %0 = vector.load %arg2[%c0, %c0_0, %c0_1] : memref<1x8x16xf32, #tpu.memory_space<vmem>>, vector<1x8x16xf32>
    %1 = vector.shape_cast %0 : vector<1x8x16xf32> to vector<8x16xf32>
    %c0_2 = arith.constant 0 : index
    %c0_3 = arith.constant 0 : index
    %c0_4 = arith.constant 0 : index
    %c0_5 = arith.constant 0 : index
    %2 = vector.load %arg3[%c0_2, %c0_3, %c0_4, %c0_5] : memref<1x1x8x2xf32, #tpu.memory_space<vmem>>, vector<1x1x8x2xf32>
    %3 = vector.shape_cast %2 : vector<1x1x8x2xf32> to vector<8x2xf32>
    %c0_6 = arith.constant 0 : index
    %c0_7 = arith.constant 0 : index
    %c0_8 = arith.constant 0 : index
    %4 = vector.load %arg4[%c0_6, %c0_7, %c0_8] : memref<3x8x8xf32, #tpu.memory_space<vmem>>, vector<1x8x8xf32>
    %5 = vector.shape_cast %4 : vector<1x8x8xf32> to vector<8x8xf32>
    %cst = arith.constant dense<0.000000e+00> : vector<8x16xf32>
    %6 = tpu.matmul %5, %1, %cst {dimension_numbers = #tpu.dot_dimension_numbers<[1], [0], [0], [1], [0, 0, 1, 1], [], []>} : vector<8x8xf32>, vector<8x16xf32>, vector<8x16xf32> -> vector<8x16xf32>
    %c1 = arith.constant 1 : index
    %c0_9 = arith.constant 0 : index
    %c0_10 = arith.constant 0 : index
    %7 = vector.load %arg4[%c1, %c0_9, %c0_10] : memref<3x8x8xf32, #tpu.memory_space<vmem>>, vector<1x8x8xf32>
    %8 = vector.shape_cast %7 : vector<1x8x8xf32> to vector<8x8xf32>
    %cst_11 = arith.constant dense<0.000000e+00> : vector<8x16xf32>
    %9 = tpu.matmul %8, %1, %cst_11 {dimension_numbers = #tpu.dot_dimension_numbers<[1], [0], [0], [1], [0, 0, 1, 1], [], []>} : vector<8x8xf32>, vector<8x16xf32>, vector<8x16xf32> -> vector<8x16xf32>
    %c2 = arith.constant 2 : index
    %c0_12 = arith.constant 0 : index
    %c0_13 = arith.constant 0 : index
    %10 = vector.load %arg4[%c2, %c0_12, %c0_13] : memref<3x8x8xf32, #tpu.memory_space<vmem>>, vector<1x8x8xf32>
    %11 = vector.shape_cast %10 : vector<1x8x8xf32> to vector<8x8xf32>
    %cst_14 = arith.constant dense<0.000000e+00> : vector<8x16xf32>
    %12 = tpu.matmul %11, %1, %cst_14 {dimension_numbers = #tpu.dot_dimension_numbers<[1], [0], [0], [1], [0, 0, 1, 1], [], []>} : vector<8x8xf32>, vector<8x16xf32>, vector<8x16xf32> -> vector<8x16xf32>
    %c0_15 = arith.constant 0 : index
    %c0_16 = arith.constant 0 : index
    %c0_17 = arith.constant 0 : index
    %13 = vector.load %arg4[%c0_15, %c0_16, %c0_17] : memref<3x8x8xf32, #tpu.memory_space<vmem>>, vector<1x8x8xf32>
    %14 = vector.shape_cast %13 : vector<1x8x8xf32> to vector<8x8xf32>
    %15 = vector.extract_strided_slice %3 {offsets = [0, 0], sizes = [8, 1], strides = [1, 1]} : vector<8x2xf32> to vector<8x1xf32>
    %cst_18 = arith.constant dense<0.000000e+00> : vector<8x1xf32>
    %16 = tpu.matmul %14, %15, %cst_18 {dimension_numbers = #tpu.dot_dimension_numbers<[1], [0], [0], [1], [0, 0, 1, 1], [], []>} : vector<8x8xf32>, vector<8x1xf32>, vector<8x1xf32> -> vector<8x1xf32>
    %c2_19 = arith.constant 2 : index
    %c0_20 = arith.constant 0 : index
    %c0_21 = arith.constant 0 : index
    %17 = vector.load %arg4[%c2_19, %c0_20, %c0_21] : memref<3x8x8xf32, #tpu.memory_space<vmem>>, vector<1x8x8xf32>
    %18 = vector.shape_cast %17 : vector<1x8x8xf32> to vector<8x8xf32>
    %19 = vector.extract_strided_slice %3 {offsets = [0, 1], sizes = [8, 1], strides = [1, 1]} : vector<8x2xf32> to vector<8x1xf32>
    %cst_22 = arith.constant dense<0.000000e+00> : vector<8x1xf32>
    %20 = tpu.matmul %18, %19, %cst_22 {dimension_numbers = #tpu.dot_dimension_numbers<[1], [0], [0], [1], [0, 0, 1, 1], [], []>} : vector<8x8xf32>, vector<8x1xf32>, vector<8x1xf32> -> vector<8x1xf32>
    %21 = vector.extract_strided_slice %6 {offsets = [0, 0], sizes = [8, 15], strides = [1, 1]} : vector<8x16xf32> to vector<8x15xf32>
    %22 = tpu.concatenate %16, %21 in 1 : vector<8x1xf32>, vector<8x15xf32> -> vector<8x16xf32>
    %23 = vector.extract_strided_slice %12 {offsets = [0, 1], sizes = [8, 15], strides = [1, 1]} : vector<8x16xf32> to vector<8x15xf32>
    %24 = tpu.concatenate %23, %20 in 1 : vector<8x15xf32>, vector<8x1xf32> -> vector<8x16xf32>
    %25 = arith.addf %22, %9 : vector<8x16xf32>
    %26 = arith.addf %25, %24 : vector<8x16xf32>
    %cst_23 = arith.constant dense<0.000000e+00> : vector<8xf32>
    %27 = vector.multi_reduction <add>, %26, %cst_23 [1] : vector<8x16xf32> to vector<8xf32>
    %28 = vector.shape_cast %27 : vector<8xf32> to vector<8x1xf32>
    %29 = arith.mulf %26, %26 : vector<8x16xf32>
    %cst_24 = arith.constant dense<0.000000e+00> : vector<8xf32>
    %30 = vector.multi_reduction <add>, %29, %cst_24 [1] : vector<8x16xf32> to vector<8xf32>
    %31 = vector.shape_cast %30 : vector<8xf32> to vector<8x1xf32>
    %32 = tpu.concatenate %28, %31 in 1 : vector<8x1xf32>, vector<8x1xf32> -> vector<8x2xf32>
    %c0_i32 = arith.constant 0 : i32
    %33 = arith.cmpi eq, %arg1, %c0_i32 : i32
    %34 = arith.extui %33 : i1 to i32
    %c0_i32_25 = arith.constant 0 : i32
    %35 = arith.cmpi ne, %34, %c0_i32_25 : i32
    scf.if %35 {
      %cst_32 = arith.constant 0.000000e+00 : f32
      %42 = vector.broadcast %cst_32 : f32 to vector<8x2xf32>
      %c0_33 = arith.constant 0 : index
      %c0_34 = arith.constant 0 : index
      %c0_35 = arith.constant 0 : index
      %43 = vector.load %arg5[%c0_33, %c0_34, %c0_35] : memref<1x8x2xf32, #tpu.memory_space<vmem>>, vector<1x8x2xf32>
      %44 = vector.shape_cast %43 : vector<1x8x2xf32> to vector<8x2xf32>
      %45 = vector.shape_cast %42 : vector<8x2xf32> to vector<1x8x2xf32>
      tpu.vector_store %arg5[%c0_33, %c0_34, %c0_35], %45 {strides = array<i32>} : memref<1x8x2xf32, #tpu.memory_space<vmem>>, vector<1x8x2xf32>,
    } else {
    }
    %c0_26 = arith.constant 0 : index
    %c0_27 = arith.constant 0 : index
    %c0_28 = arith.constant 0 : index
    %36 = vector.load %arg5[%c0_26, %c0_27, %c0_28] : memref<1x8x2xf32, #tpu.memory_space<vmem>>, vector<1x8x2xf32>
    %37 = vector.shape_cast %36 : vector<1x8x2xf32> to vector<8x2xf32>
    %38 = arith.addf %37, %32 : vector<8x2xf32>
    %c0_29 = arith.constant 0 : index
    %c0_30 = arith.constant 0 : index
    %c0_31 = arith.constant 0 : index
    %39 = vector.load %arg5[%c0_29, %c0_30, %c0_31] : memref<1x8x2xf32, #tpu.memory_space<vmem>>, vector<1x8x2xf32>
    %40 = vector.shape_cast %39 : vector<1x8x2xf32> to vector<8x2xf32>
    %41 = vector.shape_cast %38 : vector<8x2xf32> to vector<1x8x2xf32>
    tpu.vector_store %arg5[%c0_29, %c0_30, %c0_31], %41 {strides = array<i32>} : memref<1x8x2xf32, #tpu.memory_space<vmem>>, vector<1x8x2xf32>,
    return
  }
  func.func @transform_0(%arg0: i32, %arg1: i32) -> (i32, i32, i32) {
    %c0_i32 = arith.constant 0 : i32
    %c0_i32_0 = arith.constant 0 : i32
    return %arg0, %c0_i32, %arg1 : i32, i32, i32
  }
  func.func @transform_1(%arg0: i32, %arg1: i32) -> (i32, i32, i32, i32) {
    %c0_i32 = arith.constant 0 : i32
    %c0_i32_0 = arith.constant 0 : i32
    %c0_i32_1 = arith.constant 0 : i32
    return %arg0, %arg1, %c0_i32, %c0_i32_0 : i32, i32, i32, i32
  }
  func.func @transform_2(%arg0: i32, %arg1: i32) -> (i32, i32, i32) {
    %c0_i32 = arith.constant 0 : i32
    %c0_i32_0 = arith.constant 0 : i32
    %c0_i32_1 = arith.constant 0 : i32
    %c0_i32_2 = arith.constant 0 : i32
    return %c0_i32, %c0_i32_0, %c0_i32_1 : i32, i32, i32
  }
  func.func @transform_3(%arg0: i32, %arg1: i32) -> (i32, i32, i32) {
    %c0_i32 = arith.constant 0 : i32
    %c0_i32_0 = arith.constant 0 : i32
    %c0_i32_1 = arith.constant 0 : i32
    return %arg0, %c0_i32, %c0_i32_0 : i32, i32, i32
  }
}

</mosaic_0001>

<llo_original>
// kernel: tpu_custom_call.1
$region0: #{tpu_custom_call.1}
  #allocation0 [shape = 'u32[]', space=smem, size = 0x4, offset = 0x4, fixed_abs, tag = 'smem constant byte address 0x4 - core index']
  #allocation1 [shape = 'u32[144,128]{1,0:T(1,128)}', space=vmem, size = 0x12000, scoped, tag = 'internal scratch']
  %s0 = inlined_call_operand.vmem [shape: f32[2,8,16], index: 0, kind: input, shape index: {}]
  %s1 = inlined_call_operand.vmem [shape: f32[2,1,8,2], index: 1, kind: input, shape index: {}]
  %s2 = inlined_call_operand.hbm [shape: f32[3,8,8], index: 2, kind: input, shape index: {}]
  %s3 = inlined_call_operand.vmem [shape: f32[2,8,2], index: 3, kind: output, shape index: {}]
  %s4 = sld [smem:[#allocation0]]
  $region53: #{tpu_custom_call.1} parent=0
    _
  %s6 = ssub.s32 1, %s4
  %s7 = scalar_select 0, %s6, %s4
  $region1: #{tpu_custom_call.1} parent=0
    #allocation2 [shape = 'u8[12288]{0}', space=vmem, size = 0x3000, scoped, tag = 'input window, operand 2, single buffered']
    #allocation3 [shape = 's32[2]{0}', space=sflag, size = 0x8, scoped, tag = 'scoped memory for tpu_custom_call.1']
    %8 = vsyncpa [#allocation3], 0
    loop: start=0, step=1, limit=4
    $region2: #{tpu_custom_call.1} parent=1 // loop_pre_header
      _
    $region3: #{tpu_custom_call.1} parent=1 // loop_header
      %s10 = sphi 0, %s14
      %p11 = scmp.ge.s32.totalorder %s10, 4
      %s17 = sphi 0, %s29
      %s18 = sphi 0, %s25
      %s19 = sphi 0, %s17
      %s20 = sphi 0, %s18
      %s21 = sphi 0, %s19
      %s22 = sphi 0, %s20
      %s34 = sphi 0, %s36
      %s37 = sphi 0, %s34
      %s38 = sphi 0, %s37
      %s54 = sphi 0, %s38
      %s62 = sphi 0, %s64
      %s65 = sphi 0, %s62
      %s66 = sphi 0, %s65
      %s82 = sphi 0, %s66
      %s86 = sphi 0, %s86
      %s88 = sphi 0, %s86
      %s89 = sphi 0, %s88
      %s103 = sphi 0, %s89
      %s109 = sphi 0, %s111
      %s112 = sphi 0, %s109
      %s113 = sphi 0, %s112
      %s129 = sphi 0, %s113
    $region4: #{tpu_custom_call.1} parent=1 // loop_header_branch
      %13 = sbr.rel (%p11) target = $region8
    $region5: #{tpu_custom_call.1} parent=1 // loop_body
      %s15 = ssub.s32 %s10, 1
      %s16 = ssub.s32 %s10, 2
      %s23 = sadd.s32 1, %s18
      %p24 = scmp.ge.s32.totalorder %s23, 1
      %s25 = scalar_select %p24, 0, %s23
      %s26 = sadd.s32 1, %s17
      %s27 = scalar_select %p24, %s26, %s17
      %p28 = scmp.ge.s32.totalorder %s27, 2
      %s29 = scalar_select %p28, 0, %s27
      %s30 = ssub.s32 %s17, %s29
      %s31 = ssub.s32 %s18, %s25
      %s32 = sor.u32 %s30, %s31
      %p33 = scmp.eq.s32.totalorder %s32, 0
      %s35 = sadd.s32 %s34, 1
      %s36 = scalar_select %p33, %s34, %s35
      %p39 = pneg %p33
      %p40 = scmp.eq.s32.totalorder %s10, 1
      %p41 = por %p39, %p40
      %p42 = scmp.ne.s32.totalorder %s34, %s37
      %p43 = scmp.eq.s32.totalorder %s10, 0
      %p44 = por %p42, %p43
      %p45 = scmp.ne.s32.totalorder %s34, %s37
      %p46 = scmp.eq.s32.totalorder %s15, 1
      %p47 = por %p45, %p46
      %p48 = scmp.ne.s32.totalorder %s37, %s38
      %p49 = scmp.eq.s32.totalorder %s15, 0
      %p50 = por %p48, %p49
      %p51 = scmp.ne.s32.totalorder %s37, %s38
      %p52 = scmp.eq.s32.totalorder %s16, 1
      %p53 = por %p51, %p52
      %p55 = scmp.ne.s32.totalorder %s38, %s54
      %p56 = scmp.eq.s32.totalorder %s16, 0
      %p57 = por %p55, %p56
      %s58 = ssub.s32 %s17, %s29
      %s59 = ssub.s32 %s18, %s25
      %s60 = sor.u32 %s58, %s59
      %p61 = scmp.eq.s32.totalorder %s60, 0
      %s63 = sadd.s32 %s62, 1
      %s64 = scalar_select %p61, %s62, %s63
      %p67 = pneg %p61
      %p68 = scmp.eq.s32.totalorder %s10, 1
      %p69 = por %p67, %p68
      %p70 = scmp.ne.s32.totalorder %s62, %s65
      %p71 = scmp.eq.s32.totalorder %s10, 0
      %p72 = por %p70, %p71
      %p73 = scmp.ne.s32.totalorder %s62, %s65
      %p74 = scmp.eq.s32.totalorder %s15, 1
      %p75 = por %p73, %p74
      %p76 = scmp.ne.s32.totalorder %s65, %s66
      %p77 = scmp.eq.s32.totalorder %s15, 0
      %p78 = por %p76, %p77
      %p79 = scmp.ne.s32.totalorder %s65, %s66
      %p80 = scmp.eq.s32.totalorder %s16, 1
      %p81 = por %p79, %p80
      %p83 = scmp.ne.s32.totalorder %s66, %s82
      %p84 = scmp.eq.s32.totalorder %s16, 0
      %p85 = por %p83, %p84
      %s87 = sadd.s32 %s86, 1
      %p90 = scmp.eq.s32.totalorder %s10, 1
      %p91 = scmp.ne.s32.totalorder %s86, %s88
      %p92 = scmp.eq.s32.totalorder %s10, 0
      %p93 = por %p91, %p92
      %p94 = scmp.ne.s32.totalorder %s86, %s88
      %p95 = scmp.eq.s32.totalorder %s15, 1
      %p96 = por %p94, %p95
      %p97 = scmp.ne.s32.totalorder %s88, %s89
      %p98 = scmp.eq.s32.totalorder %s15, 0
      %p99 = por %p97, %p98
      %p100 = scmp.ne.s32.totalorder %s88, %s89
      %p101 = scmp.eq.s32.totalorder %s16, 1
      %p102 = por %p100, %p101
      %p104 = scmp.ne.s32.totalorder %s89, %s103
      %p105 = scmp.eq.s32.totalorder %s16, 0
      %p106 = por %p104, %p105
      %s107 = ssub.s32 %s17, %s29
      %p108 = scmp.eq.s32.totalorder %s107, 0
      %s110 = sadd.s32 %s109, 1
      %s111 = scalar_select %p108, %s109, %s110
      %p114 = pneg %p108
      %p115 = scmp.eq.s32.totalorder %s10, 1
      %p116 = por %p114, %p115
      %p117 = scmp.ne.s32.totalorder %s109, %s112
      %p118 = scmp.eq.s32.totalorder %s10, 0
      %p119 = por %p117, %p118
      %p120 = scmp.ne.s32.totalorder %s109, %s112
      %p121 = scmp.eq.s32.totalorder %s15, 1
      %p122 = por %p120, %p121
      %p123 = scmp.ne.s32.totalorder %s112, %s113
      %p124 = scmp.eq.s32.totalorder %s15, 0
      %p125 = por %p123, %p124
      %p126 = scmp.ne.s32.totalorder %s112, %s113
      %p127 = scmp.eq.s32.totalorder %s16, 1
      %p128 = por %p126, %p127
      %p130 = scmp.ne.s32.totalorder %s113, %s129
      %p131 = scmp.eq.s32.totalorder %s16, 0
      %p132 = por %p130, %p131
      %p133 = scmp.le.s32.totalorder 1, %s10
      %p134 = scmp.lt.s32.totalorder %s10, 3
      %p135 = pnand %p133, %p134
      %p136 = pneg %p135
      // Predicated region
      $region9: #{tpu_custom_call.1} parent=5 // pred_check
        _
      $region10: #{tpu_custom_call.1} parent=5 // pred_check_branch
        %138 = sbr.rel (%p135) target = $region12
      $region11: #{tpu_custom_call.1} parent=5 // pred_region
        %s139 = ssub.s32 %s10, 1
        // Predicated region
        $region13: #{tpu_custom_call.1} parent=11 // pred_check
          %p140 = pneg %p99
        $region14: #{tpu_custom_call.1} parent=11 // pred_check_branch
          %142 = sbr.rel (%p140) target = $region16
        $region15: #{tpu_custom_call.1} parent=11 // pred_region
          %s144 = ssub.s32 384, 384
          %145 = vsyncadd [#allocation3], %s144
          %s146 = sshll.u32 [#allocation2], 4
          %s147 = int_to_ptr.vmem [resolvable:$true] %s146
          %152 = dma.hbm_to_vmem [thread:$0]  %s2, 384, %s147, [#allocation3], 128, 128, 8
        $region16: #{tpu_custom_call.1} parent=11 // pred_fallthru
          _
      $region12: #{tpu_custom_call.1} parent=5 // pred_fallthru
        _
      %p153 = scmp.lt.s32.totalorder %s10, 2
      // Predicated region
      $region17: #{tpu_custom_call.1} parent=5 // pred_check
        %p154 = pneg %p153
      $region18: #{tpu_custom_call.1} parent=5 // pred_check_branch
        %156 = sbr.rel (%p154) target = $region20
      $region19: #{tpu_custom_call.1} parent=5 // pred_region
        // Predicated region
        $region21: #{tpu_custom_call.1} parent=19 // pred_check
          %p157 = pneg %p44
        $region22: #{tpu_custom_call.1} parent=19 // pred_check_branch
          %159 = sbr.rel (%p157) target = $region24
        $region23: #{tpu_custom_call.1} parent=19 // pred_region
          %p160 = scmp.lt.s32.totalorder %s17, 1
          %s161 = scalar_select %p160, %s17, 1
          %p162 = scmp.lt.s32.totalorder %s18, 0
          %s163 = scalar_select %p162, %s18, 0
          %s164 = sadd.s32 %s163, %s161
          %s165 = smul.addr %s164, 8
          %s166 = scalar_lea.vmem %s0, %s165
        $region24: #{tpu_custom_call.1} parent=19 // pred_fallthru
          _
        // Predicated region
        $region25: #{tpu_custom_call.1} parent=19 // pred_check
          %p167 = pneg %p72
        $region26: #{tpu_custom_call.1} parent=19 // pred_check_branch
          %169 = sbr.rel (%p167) target = $region28
        $region27: #{tpu_custom_call.1} parent=19 // pred_region
          %p170 = scmp.lt.s32.totalorder %s17, 1
          %s171 = scalar_select %p170, %s17, 1
          %p172 = scmp.lt.s32.totalorder %s18, 0
          %s173 = scalar_select %p172, %s18, 0
          %s174 = sadd.s32 %s173, %s171
          %s175 = smul.addr %s174, 8
          %s176 = scalar_lea.vmem %s1, %s175
        $region28: #{tpu_custom_call.1} parent=19 // pred_fallthru
          _
      $region20: #{tpu_custom_call.1} parent=5 // pred_fallthru
        _
      %p177 = scmp.le.s32.totalorder 1, %s10
      %p178 = scmp.lt.s32.totalorder %s10, 3
      %p179 = pnand %p177, %p178
      %p180 = pneg %p179
      // Predicated region
      $region29: #{tpu_custom_call.1} parent=5 // pred_check
        _
      $region30: #{tpu_custom_call.1} parent=5 // pred_check_branch
        %182 = sbr.rel (%p179) target = $region32
      $region31: #{tpu_custom_call.1} parent=5 // pred_region
        %s183 = ssub.s32 %s10, 1
        // Predicated region
        $region33: #{tpu_custom_call.1} parent=31 // pred_check
          %p184 = pneg %p99
        $region34: #{tpu_custom_call.1} parent=31 // pred_check_branch
          %186 = sbr.rel (%p184) target = $region36
        $region35: #{tpu_custom_call.1} parent=31 // pred_region
          %187 = dma.done [#allocation3], 384
        $region36: #{tpu_custom_call.1} parent=31 // pred_fallthru
          _
        %p188 = scmp.lt.s32.totalorder %s19, 1
        %s189 = scalar_select %p188, %s19, 1
        %p190 = scmp.lt.s32.totalorder %s20, 0
        %s191 = scalar_select %p190, %s20, 0
        %s192 = sadd.s32 %s191, %s189
        %s193 = smul.addr %s192, 8
        %s194 = scalar_lea.vmem %s0, %s193
        %p195 = pneg %p50
        %p196 = pneg %p47
        %p197 = scmp.lt.s32.totalorder %s19, 1
        %s198 = scalar_select %p197, %s19, 1
        %p199 = scmp.lt.s32.totalorder %s20, 0
        %s200 = scalar_select %p199, %s20, 0
        %s201 = sadd.s32 %s200, %s198
        %s202 = smul.addr %s201, 8
        %s203 = scalar_lea.vmem %s1, %s202
        %p204 = pneg %p78
        %p205 = pneg %p75
        %p206 = pneg %p99
        %p207 = pneg %p96
        %p208 = pneg %p125
        %p209 = pneg %p122
        %p210 = scmp.lt.s32.totalorder %s19, 1
        %s211 = scalar_select %p210, %s19, 1
        %s212 = smul.addr %s211, 8
        %s213 = scalar_lea.vmem %s3, %s212
        %p214 = scmp.lt.s32.totalorder %s19, 1
        %s215 = scalar_select %p214, %s19, 1
        %p216 = scmp.lt.s32.totalorder %s20, 0
        %s217 = scalar_select %p216, %s20, 0
        %s218 = sadd.s32 %s217, %s215
        %s219 = smul.addr %s218, 8
        %s220 = scalar_lea.vmem %s0, %s219
        %p221 = scmp.lt.s32.totalorder %s19, 1
        %s222 = scalar_select %p221, %s19, 1
        %p223 = scmp.lt.s32.totalorder %s20, 0
        %s224 = scalar_select %p223, %s20, 0
        %s225 = sadd.s32 %s224, %s222
        %s226 = smul.addr %s225, 8
        %s227 = scalar_lea.vmem %s1, %s226
        %p228 = scmp.lt.s32.totalorder %s19, 1
        %s229 = scalar_select %p228, %s19, 1
        %s230 = smul.addr %s229, 8
        %s231 = scalar_lea.vmem %s3, %s230
        %v232 = vld [vmem:[%s220] sm:$0xff]
        %v233 = vld [vmem:[%s227] sm:$0xff]
        %v234 = vld [vmem:[#allocation2] sm:$0xff]
        %vm235 = vcmask 64512
        %v237 = vsel %vm235, %v234, 0
        %239 = vmatprep.subr.mxu0 0.0
        %240 = vmatpush1.msra.mxu0 0.0
        %241 = vmatprep.subr.mxu0 0.0
        %242 = vmatpush1.msra.mxu0 0.0
        %243 = vmatprep.subr.mxu0 0.0
        %244 = vmatpush1.msra.mxu0 0.0
        %245 = vmatprep.subr.mxu0 0.0
        %246 = vmatpush1.msra.mxu0 0.0
        %247 = vmatprep.subr.mxu0 0.0
        %248 = vmatpush1.msra.mxu0 0.0
        %249 = vmatprep.subr.mxu0 0.0
        %250 = vmatpush1.msra.mxu0 0.0
        %251 = vmatprep.subr.mxu0 0.0
        %252 = vmatpush1.msra.mxu0 0.0
        %253 = vmatprep.subr.mxu0 0.0
        %254 = vmatpush1.msra.mxu0 0.0
        %255 = vmatprep.subr.mxu0 0.0
        %256 = vmatpush1.msra.mxu0 0.0
        %257 = vmatprep.subr.mxu0 0.0
        %258 = vmatpush1.msra.mxu0 0.0
        %259 = vmatprep.subr.mxu0 0.0
        %260 = vmatpush1.msra.mxu0 0.0
        %261 = vmatprep.subr.mxu0 0.0
        %262 = vmatpush1.msra.mxu0 0.0
        %263 = vmatprep.subr.mxu0 0.0
        %264 = vmatpush1.msra.mxu0 0.0
        %265 = vmatprep.subr.mxu0 0.0
        %266 = vmatpush1.msra.mxu0 0.0
        %267 = vmatprep.subr.mxu0 0.0
        %268 = vmatpush1.msra.mxu0 0.0
        %269 = vmatprep.subr.mxu0 0.0
        %270 = vmatpush1.msra.mxu0 %v232
        %271 = vmatprep.subr.mxu0 0.0
        %272 = vmatpush2.msra.mxu0 0.0
        %273 = vmatprep.subr.mxu0 0.0
        %274 = vmatpush2.msra.mxu0 0.0
        %275 = vmatprep.subr.mxu0 0.0
        %276 = vmatpush2.msra.mxu0 0.0
        %277 = vmatprep.subr.mxu0 0.0
        %278 = vmatpush2.msra.mxu0 0.0
        %279 = vmatprep.subr.mxu0 0.0
        %280 = vmatpush2.msra.mxu0 0.0
        %281 = vmatprep.subr.mxu0 0.0
        %282 = vmatpush2.msra.mxu0 0.0
        %283 = vmatprep.subr.mxu0 0.0
        %284 = vmatpush2.msra.mxu0 0.0
        %285 = vmatprep.subr.mxu0 0.0
        %286 = vmatpush2.msra.mxu0 0.0
        %287 = vmatprep.subr.mxu0 0.0
        %288 = vmatpush2.msra.mxu0 0.0
        %289 = vmatprep.subr.mxu0 0.0
        %290 = vmatpush2.msra.mxu0 0.0
        %291 = vmatprep.subr.mxu0 0.0
        %292 = vmatpush2.msra.mxu0 0.0
        %293 = vmatprep.subr.mxu0 0.0
        %294 = vmatpush2.msra.mxu0 0.0
        %295 = vmatprep.subr.mxu0 0.0
        %296 = vmatpush2.msra.mxu0 0.0
        %297 = vmatprep.subr.mxu0 0.0
        %298 = vmatpush2.msra.mxu0 0.0
        %299 = vmatprep.subr.mxu0 0.0
        %300 = vmatpush2.msra.mxu0 0.0
        %301 = vmatprep.subr.mxu0 0.0
        %302 = vmatpush2.msra.mxu0 0.0
        %303 = vmatprep.mubr.f32.mxu0 0.0
        %304 = vmatmul.mubr.f32.gmra.mxu0 %v237
        %v305 = vpop.f32.mrf.mxu0
        %v306 = vadd.f32 0.0, %v305
        %v307 = vpop.f32.mrf.mxu0
        %308 = vdwg.mxu0
        %s309 = scalar_lea.vmem [#allocation2], 8
        %v310 = vld [vmem:[%s309] sm:$0xff]
        %v312 = vsel %vm235, %v310, 0
        %314 = vmatprep.subr.mxu0 0.0
        %315 = vmatpush1.msra.mxu0 0.0
        %316 = vmatprep.subr.mxu0 0.0
        %317 = vmatpush1.msra.mxu0 0.0
        %318 = vmatprep.subr.mxu0 0.0
        %319 = vmatpush1.msra.mxu0 0.0
        %320 = vmatprep.subr.mxu0 0.0
        %321 = vmatpush1.msra.mxu0 0.0
        %322 = vmatprep.subr.mxu0 0.0
        %323 = vmatpush1.msra.mxu0 0.0
        %324 = vmatprep.subr.mxu0 0.0
        %325 = vmatpush1.msra.mxu0 0.0
        %326 = vmatprep.subr.mxu0 0.0
        %327 = vmatpush1.msra.mxu0 0.0
        %328 = vmatprep.subr.mxu0 0.0
        %329 = vmatpush1.msra.mxu0 0.0
        %330 = vmatprep.subr.mxu0 0.0
        %331 = vmatpush1.msra.mxu0 0.0
        %332 = vmatprep.subr.mxu0 0.0
        %333 = vmatpush1.msra.mxu0 0.0
        %334 = vmatprep.subr.mxu0 0.0
        %335 = vmatpush1.msra.mxu0 0.0
        %336 = vmatprep.subr.mxu0 0.0
        %337 = vmatpush1.msra.mxu0 0.0
        %338 = vmatprep.subr.mxu0 0.0
        %339 = vmatpush1.msra.mxu0 0.0
        %340 = vmatprep.subr.mxu0 0.0
        %341 = vmatpush1.msra.mxu0 0.0
        %342 = vmatprep.subr.mxu0 0.0
        %343 = vmatpush1.msra.mxu0 0.0
        %344 = vmatprep.subr.mxu0 0.0
        %345 = vmatpush1.msra.mxu0 %v232
        %346 = vmatprep.subr.mxu0 0.0
        %347 = vmatpush2.msra.mxu0 0.0
        %348 = vmatprep.subr.mxu0 0.0
        %349 = vmatpush2.msra.mxu0 0.0
        %350 = vmatprep.subr.mxu0 0.0
        %351 = vmatpush2.msra.mxu0 0.0
        %352 = vmatprep.subr.mxu0 0.0
        %353 = vmatpush2.msra.mxu0 0.0
        %354 = vmatprep.subr.mxu0 0.0
        %355 = vmatpush2.msra.mxu0 0.0
        %356 = vmatprep.subr.mxu0 0.0
        %357 = vmatpush2.msra.mxu0 0.0
        %358 = vmatprep.subr.mxu0 0.0
        %359 = vmatpush2.msra.mxu0 0.0
        %360 = vmatprep.subr.mxu0 0.0
        %361 = vmatpush2.msra.mxu0 0.0
        %362 = vmatprep.subr.mxu0 0.0
        %363 = vmatpush2.msra.mxu0 0.0
        %364 = vmatprep.subr.mxu0 0.0
        %365 = vmatpush2.msra.mxu0 0.0
        %366 = vmatprep.subr.mxu0 0.0
        %367 = vmatpush2.msra.mxu0 0.0
        %368 = vmatprep.subr.mxu0 0.0
        %369 = vmatpush2.msra.mxu0 0.0
        %370 = vmatprep.subr.mxu0 0.0
        %371 = vmatpush2.msra.mxu0 0.0
        %372 = vmatprep.subr.mxu0 0.0
        %373 = vmatpush2.msra.mxu0 0.0
        %374 = vmatprep.subr.mxu0 0.0
        %375 = vmatpush2.msra.mxu0 0.0
        %376 = vmatprep.subr.mxu0 0.0
        %377 = vmatpush2.msra.mxu0 0.0
        %378 = vmatprep.mubr.f32.mxu0 0.0
        %379 = vmatmul.mubr.f32.gmra.mxu0 %v312
        %v380 = vpop.f32.mrf.mxu0
        %v381 = vadd.f32 0.0, %v380
        %v382 = vpop.f32.mrf.mxu0
        %383 = vdwg.mxu0
        %s384 = scalar_lea.vmem [#allocation2], 16
        %v385 = vld [vmem:[%s384] sm:$0xff]
        %v387 = vsel %vm235, %v385, 0
        %389 = vmatprep.subr.mxu0 0.0
        %390 = vmatpush1.msra.mxu0 0.0
        %391 = vmatprep.subr.mxu0 0.0
        %392 = vmatpush1.msra.mxu0 0.0
        %393 = vmatprep.subr.mxu0 0.0
        %394 = vmatpush1.msra.mxu0 0.0
        %395 = vmatprep.subr.mxu0 0.0
        %396 = vmatpush1.msra.mxu0 0.0
        %397 = vmatprep.subr.mxu0 0.0
        %398 = vmatpush1.msra.mxu0 0.0
        %399 = vmatprep.subr.mxu0 0.0
        %400 = vmatpush1.msra.mxu0 0.0
        %401 = vmatprep.subr.mxu0 0.0
        %402 = vmatpush1.msra.mxu0 0.0
        %403 = vmatprep.subr.mxu0 0.0
        %404 = vmatpush1.msra.mxu0 0.0
        %405 = vmatprep.subr.mxu0 0.0
        %406 = vmatpush1.msra.mxu0 0.0
        %407 = vmatprep.subr.mxu0 0.0
        %408 = vmatpush1.msra.mxu0 0.0
        %409 = vmatprep.subr.mxu0 0.0
        %410 = vmatpush1.msra.mxu0 0.0
        %411 = vmatprep.subr.mxu0 0.0
        %412 = vmatpush1.msra.mxu0 0.0
        %413 = vmatprep.subr.mxu0 0.0
        %414 = vmatpush1.msra.mxu0 0.0
        %415 = vmatprep.subr.mxu0 0.0
        %416 = vmatpush1.msra.mxu0 0.0
        %417 = vmatprep.subr.mxu0 0.0
        %418 = vmatpush1.msra.mxu0 0.0
        %419 = vmatprep.subr.mxu0 0.0
        %420 = vmatpush1.msra.mxu0 %v232
        %421 = vmatprep.subr.mxu0 0.0
        %422 = vmatpush2.msra.mxu0 0.0
        %423 = vmatprep.subr.mxu0 0.0
        %424 = vmatpush2.msra.mxu0 0.0
        %425 = vmatprep.subr.mxu0 0.0
        %426 = vmatpush2.msra.mxu0 0.0
        %427 = vmatprep.subr.mxu0 0.0
        %428 = vmatpush2.msra.mxu0 0.0
        %429 = vmatprep.subr.mxu0 0.0
        %430 = vmatpush2.msra.mxu0 0.0
        %431 = vmatprep.subr.mxu0 0.0
        %432 = vmatpush2.msra.mxu0 0.0
        %433 = vmatprep.subr.mxu0 0.0
        %434 = vmatpush2.msra.mxu0 0.0
        %435 = vmatprep.subr.mxu0 0.0
        %436 = vmatpush2.msra.mxu0 0.0
        %437 = vmatprep.subr.mxu0 0.0
        %438 = vmatpush2.msra.mxu0 0.0
        %439 = vmatprep.subr.mxu0 0.0
        %440 = vmatpush2.msra.mxu0 0.0
        %441 = vmatprep.subr.mxu0 0.0
        %442 = vmatpush2.msra.mxu0 0.0
        %443 = vmatprep.subr.mxu0 0.0
        %444 = vmatpush2.msra.mxu0 0.0
        %445 = vmatprep.subr.mxu0 0.0
        %446 = vmatpush2.msra.mxu0 0.0
        %447 = vmatprep.subr.mxu0 0.0
        %448 = vmatpush2.msra.mxu0 0.0
        %449 = vmatprep.subr.mxu0 0.0
        %450 = vmatpush2.msra.mxu0 0.0
        %451 = vmatprep.subr.mxu0 0.0
        %452 = vmatpush2.msra.mxu0 0.0
        %453 = vmatprep.mubr.f32.mxu0 0.0
        %454 = vmatmul.mubr.f32.gmra.mxu0 %v387
        %v455 = vpop.f32.mrf.mxu0
        %v456 = vadd.f32 0.0, %v455
        %v457 = vpop.f32.mrf.mxu0
        %458 = vdwg.mxu0
        %459 = vmatprep.subr.mxu0 0.0
        %460 = vmatpush1.msra.mxu0 0.0
        %461 = vmatprep.subr.mxu0 0.0
        %462 = vmatpush1.msra.mxu0 0.0
        %463 = vmatprep.subr.mxu0 0.0
        %464 = vmatpush1.msra.mxu0 0.0
        %465 = vmatprep.subr.mxu0 0.0
        %466 = vmatpush1.msra.mxu0 0.0
        %467 = vmatprep.subr.mxu0 0.0
        %468 = vmatpush1.msra.mxu0 0.0
        %469 = vmatprep.subr.mxu0 0.0
        %470 = vmatpush1.msra.mxu0 0.0
        %471 = vmatprep.subr.mxu0 0.0
        %472 = vmatpush1.msra.mxu0 0.0
        %473 = vmatprep.subr.mxu0 0.0
        %474 = vmatpush1.msra.mxu0 0.0
        %475 = vmatprep.subr.mxu0 0.0
        %476 = vmatpush1.msra.mxu0 0.0
        %477 = vmatprep.subr.mxu0 0.0
        %478 = vmatpush1.msra.mxu0 0.0
        %479 = vmatprep.subr.mxu0 0.0
        %480 = vmatpush1.msra.mxu0 0.0
        %481 = vmatprep.subr.mxu0 0.0
        %482 = vmatpush1.msra.mxu0 0.0
        %483 = vmatprep.subr.mxu0 0.0
        %484 = vmatpush1.msra.mxu0 0.0
        %485 = vmatprep.subr.mxu0 0.0
        %486 = vmatpush1.msra.mxu0 0.0
        %487 = vmatprep.subr.mxu0 0.0
        %488 = vmatpush1.msra.mxu0 0.0
        %489 = vmatprep.subr.mxu0 0.0
        %490 = vmatpush1.msra.mxu0 %v233
        %491 = vmatprep.subr.mxu0 0.0
        %492 = vmatpush2.msra.mxu0 0.0
        %493 = vmatprep.subr.mxu0 0.0
        %494 = vmatpush2.msra.mxu0 0.0
        %495 = vmatprep.subr.mxu0 0.0
        %496 = vmatpush2.msra.mxu0 0.0
        %497 = vmatprep.subr.mxu0 0.0
        %498 = vmatpush2.msra.mxu0 0.0
        %499 = vmatprep.subr.mxu0 0.0
        %500 = vmatpush2.msra.mxu0 0.0
        %501 = vmatprep.subr.mxu0 0.0
        %502 = vmatpush2.msra.mxu0 0.0
        %503 = vmatprep.subr.mxu0 0.0
        %504 = vmatpush2.msra.mxu0 0.0
        %505 = vmatprep.subr.mxu0 0.0
        %506 = vmatpush2.msra.mxu0 0.0
        %507 = vmatprep.subr.mxu0 0.0
        %508 = vmatpush2.msra.mxu0 0.0
        %509 = vmatprep.subr.mxu0 0.0
        %510 = vmatpush2.msra.mxu0 0.0
        %511 = vmatprep.subr.mxu0 0.0
        %512 = vmatpush2.msra.mxu0 0.0
        %513 = vmatprep.subr.mxu0 0.0
        %514 = vmatpush2.msra.mxu0 0.0
        %515 = vmatprep.subr.mxu0 0.0
        %516 = vmatpush2.msra.mxu0 0.0
        %517 = vmatprep.subr.mxu0 0.0
        %518 = vmatpush2.msra.mxu0 0.0
        %519 = vmatprep.subr.mxu0 0.0
        %520 = vmatpush2.msra.mxu0 0.0
        %521 = vmatprep.subr.mxu0 0.0
        %522 = vmatpush2.msra.mxu0 0.0
        %523 = vmatprep.mubr.f32.mxu0 0.0
        %524 = vmatmul.mubr.f32.gmra.mxu0 %v237
        %v525 = vpop.f32.mrf.mxu0
        %v526 = vadd.f32 0.0, %v525
        %v527 = vpop.f32.mrf.mxu0
        %528 = vdwg.mxu0
        %530 = vrot.lane.b32.xlu0 %v233, 127
        %v531 = vpop.permute.xlu0 %530
        %533 = vmatprep.subr.mxu0 0.0
        %534 = vmatpush1.msra.mxu0 0.0
        %535 = vmatprep.subr.mxu0 0.0
        %536 = vmatpush1.msra.mxu0 0.0
        %537 = vmatprep.subr.mxu0 0.0
        %538 = vmatpush1.msra.mxu0 0.0
        %539 = vmatprep.subr.mxu0 0.0
        %540 = vmatpush1.msra.mxu0 0.0
        %541 = vmatprep.subr.mxu0 0.0
        %542 = vmatpush1.msra.mxu0 0.0
        %543 = vmatprep.subr.mxu0 0.0
        %544 = vmatpush1.msra.mxu0 0.0
        %545 = vmatprep.subr.mxu0 0.0
        %546 = vmatpush1.msra.mxu0 0.0
        %547 = vmatprep.subr.mxu0 0.0
        %548 = vmatpush1.msra.mxu0 0.0
        %549 = vmatprep.subr.mxu0 0.0
        %550 = vmatpush1.msra.mxu0 0.0
        %551 = vmatprep.subr.mxu0 0.0
        %552 = vmatpush1.msra.mxu0 0.0
        %553 = vmatprep.subr.mxu0 0.0
        %554 = vmatpush1.msra.mxu0 0.0
        %555 = vmatprep.subr.mxu0 0.0
        %556 = vmatpush1.msra.mxu0 0.0
        %557 = vmatprep.subr.mxu0 0.0
        %558 = vmatpush1.msra.mxu0 0.0
        %559 = vmatprep.subr.mxu0 0.0
        %560 = vmatpush1.msra.mxu0 0.0
        %561 = vmatprep.subr.mxu0 0.0
        %562 = vmatpush1.msra.mxu0 0.0
        %563 = vmatprep.subr.mxu0 0.0
        %564 = vmatpush1.msra.mxu0 %v531
        %565 = vmatprep.subr.mxu0 0.0
        %566 = vmatpush2.msra.mxu0 0.0
        %567 = vmatprep.subr.mxu0 0.0
        %568 = vmatpush2.msra.mxu0 0.0
        %569 = vmatprep.subr.mxu0 0.0
        %570 = vmatpush2.msra.mxu0 0.0
        %571 = vmatprep.subr.mxu0 0.0
        %572 = vmatpush2.msra.mxu0 0.0
        %573 = vmatprep.subr.mxu0 0.0
        %574 = vmatpush2.msra.mxu0 0.0
        %575 = vmatprep.subr.mxu0 0.0
        %576 = vmatpush2.msra.mxu0 0.0
        %577 = vmatprep.subr.mxu0 0.0
        %578 = vmatpush2.msra.mxu0 0.0
        %579 = vmatprep.subr.mxu0 0.0
        %580 = vmatpush2.msra.mxu0 0.0
        %581 = vmatprep.subr.mxu0 0.0
        %582 = vmatpush2.msra.mxu0 0.0
        %583 = vmatprep.subr.mxu0 0.0
        %584 = vmatpush2.msra.mxu0 0.0
        %585 = vmatprep.subr.mxu0 0.0
        %586 = vmatpush2.msra.mxu0 0.0
        %587 = vmatprep.subr.mxu0 0.0
        %588 = vmatpush2.msra.mxu0 0.0
        %589 = vmatprep.subr.mxu0 0.0
        %590 = vmatpush2.msra.mxu0 0.0
        %591 = vmatprep.subr.mxu0 0.0
        %592 = vmatpush2.msra.mxu0 0.0
        %593 = vmatprep.subr.mxu0 0.0
        %594 = vmatpush2.msra.mxu0 0.0
        %595 = vmatprep.subr.mxu0 0.0
        %596 = vmatpush2.msra.mxu0 0.0
        %597 = vmatprep.mubr.f32.mxu0 0.0
        %598 = vmatmul.mubr.f32.gmra.mxu0 %v387
        %v599 = vpop.f32.mrf.mxu0
        %v600 = vadd.f32 0.0, %v599
        %v601 = vpop.f32.mrf.mxu0
        %602 = vdwg.mxu0
        %604 = vrot.lane.b32.xlu0 %v306, 1
        %v605 = vpop.permute.xlu0 %604
        %vm607 = vcmask 7168
        %v608 = vsel %vm607, %v526, %v605
        %610 = vrot.lane.b32.xlu0 %v456, 127
        %v611 = vpop.permute.xlu0 %610
        %614 = vrot.lane.b32.xlu0 %v600, 15
        %v615 = vpop.permute.xlu0 %614
        %vm617 = vcmask 121856
        %v618 = vsel %vm617, %v611, %v615
        %v619 = vadd.f32 %v608, %v381
        %v620 = vadd.f32 %v619, %v618
        %vm621 = vcmask 130048
        %v622 = vsel %vm621, %v620, 0.0
        %623 = vadd.xlane.f32.xlu0 %v622
        %v624 = vpop.xlane.xlu0 %623
        %v625 = vmul.f32 %v620, %v620
        %v626 = vsel %vm621, %v625, 0.0
        %627 = vadd.xlane.f32.xlu0 %v626
        %v628 = vpop.xlane.xlu0 %627
        %v629 = vsel %vm607, %v624, %v628
        %p630 = scmp.eq.s32.totalorder %s20, 0
        // Predicated region
        $region37: #{tpu_custom_call.1} parent=31 // pred_check
          %p631 = pneg %p630
        $region38: #{tpu_custom_call.1} parent=31 // pred_check_branch
          %633 = sbr.rel (%p631) target = $region40
        $region39: #{tpu_custom_call.1} parent=31 // pred_region
          %vm634 = vcmask 15360
          %635 = vst.msk [vmem:[%s231] sm:$0xff] %vm634, 0.0
        $region40: #{tpu_custom_call.1} parent=31 // pred_fallthru
          _
        %v636 = vld [vmem:[%s231] sm:$0xff]
        %v637 = vadd.f32 %v636, %v629
        %vm638 = vcmask 15360
        %639 = vst.msk [vmem:[%s231] sm:$0xff] %vm638, %v637
        %p640 = scmp.lt.s32.totalorder %s19, 1
        %s641 = scalar_select %p640, %s19, 1
        %s642 = smul.addr %s641, 8
        %s643 = scalar_lea.vmem %s3, %s642
        // Predicated region
        $region41: #{tpu_custom_call.1} parent=31 // pred_check
          %p644 = pneg %p122
        $region42: #{tpu_custom_call.1} parent=31 // pred_check_branch
          %646 = sbr.rel (%p644) target = $region44
        $region43: #{tpu_custom_call.1} parent=31 // pred_region
          _
        $region44: #{tpu_custom_call.1} parent=31 // pred_fallthru
          _
      $region32: #{tpu_custom_call.1} parent=5 // pred_fallthru
        _
      %p647 = scmp.le.s32.totalorder 2, %s10
      // Predicated region
      $region45: #{tpu_custom_call.1} parent=5 // pred_check
        %p648 = pneg %p647
      $region46: #{tpu_custom_call.1} parent=5 // pred_check_branch
        %650 = sbr.rel (%p648) target = $region48
      $region47: #{tpu_custom_call.1} parent=5 // pred_region
        %s651 = ssub.s32 %s10, 2
        // Predicated region
        $region49: #{tpu_custom_call.1} parent=47 // pred_check
          %p652 = pneg %p128
        $region50: #{tpu_custom_call.1} parent=47 // pred_check_branch
          %654 = sbr.rel (%p652) target = $region52
        $region51: #{tpu_custom_call.1} parent=47 // pred_region
          %p655 = scmp.lt.s32.totalorder %s21, 1
          %s656 = scalar_select %p655, %s21, 1
          %s657 = smul.addr %s656, 8
          %s658 = scalar_lea.vmem %s3, %s657
        $region52: #{tpu_custom_call.1} parent=47 // pred_fallthru
          _
      $region48: #{tpu_custom_call.1} parent=5 // pred_fallthru
        _
    $region6: #{tpu_custom_call.1} parent=1 // loop_footer
      %s14 = sadd.s32 1, %s10
    $region7: #{tpu_custom_call.1} parent=1 // loop_footer_branch
      %9 = sbr.rel target = $region3
    $region8: #{tpu_custom_call.1} parent=1 // loop_exit
      _
    %659 = vsyncpa [#allocation3], 1
    %s660 = scalar_lea.sflag [#allocation3], 1
    %661 = vsyncpa %s660, 1

</llo_original>
